<compile_context>
chip_gen: v7x
topology: tpu7x:2x2x1
jax: 0.10.0
libtpu: 0.0.40
codegen_flags: <defaults>
</compile_context>

<pallas_src>
import functools

import jax
import jax.numpy as jnp
from jax.experimental import pallas as pl
from jax.experimental.pallas import tpu as pltpu


def _row_sum_kernel(x_ref, s_ref, *, hw, chunk):
    """x_ref: (tr, chunk) input tile; s_ref: (tr, 1) f32 running row sums."""
    c = pl.program_id(1)

    @pl.when(c == 0)
    def _():
        s_ref[...] = jnp.zeros_like(s_ref)

    x = x_ref[...].astype(jnp.float32)
    if hw % chunk != 0:
        # Only the padded tail chunk carries garbage lanes; the mask is cheap
        # VPU work and the kernel is DMA-bound, so it never hits the roofline.
        col = jax.lax.broadcasted_iota(jnp.int32, x.shape, dimension=1)
        x = jnp.where(col < (hw - c * chunk), x, 0.0)
    s_ref[...] += jnp.sum(x, axis=1, keepdims=True)


def _hw_budgets():
    """(per-tile input budget bytes, vmem_limit_bytes), tuned per TPU generation."""
    budget, limit = 12 << 20, 32 << 20          # v5e/v6e: 8-16 MiB steps saturate HBM
    try:
        info = pltpu.get_tpu_info()
        vmem = getattr(info, "vmem_capacity_bytes", None)
        if vmem is not None and vmem <= (64 << 20):
            # v7x-class (64 MiB VMEM/TC, ~3.2 TB/s HBM): bigger steps amortize
            # the ~0.35us per-step overhead; 2x-buffered tile stays < 56 MiB.
            budget, limit = 24 << 20, 56 << 20
    except Exception:
        pass  # conservative defaults work on every generation
    return budget, limit


def _plan_tiles(rows, hw, itemsize, budget_bytes):
    """Pick (row_tile, hw_chunk) so the double-buffered input fits the budget."""
    # Sublane packing factor: 8 rows/vreg for f32, 16 for bf16, 32 for int8/fp8.
    sub = 8 * max(1, 4 // itemsize)
    if rows <= sub:
        tr = rows                               # full dim: always legal
    else:
        rows_fit = budget_bytes // max(1, hw * itemsize)
        tr = min(rows, max(sub, (rows_fit // sub) * sub))
    # Give the "parallel" row axis at least 2 blocks when rows allow it, so
    # v7x's second TensorCore gets work (costs ~0.35us/step elsewhere).
    if -(-rows // tr) < 2 and rows >= 2 * sub:
        tr = (-(-((rows + 1) // 2) // sub)) * sub
    # Chunk HW so one input tile stays within the budget; chunks are lane-aligned.
    max_chunk = budget_bytes // max(1, tr * itemsize)
    if hw <= max_chunk:
        chunk = hw                              # full dim: always legal
    else:
        chunk = max(128, (max_chunk // 128) * 128)
    return tr, chunk


def color_loss_with_regularization(x, regularization_weight):
    """x: [B, 3, H, W] (NCHW), float32 or bf16. Returns loss of shape [B, 1, 1, 1]."""
    B, C, H, W = x.shape
    assert C == 3, "ColorLossWithRegularization expects exactly 3 channels"
    hw = H * W
    rows = B * 3

    # Row-per-channel flatten (contiguous, free): each row is one channel plane.
    x2d = x.reshape(rows, hw)
    itemsize = jnp.dtype(x.dtype).itemsize

    budget, vmem_limit = _hw_budgets()
    tr, chunk = _plan_tiles(rows, hw, itemsize, budget)
    grid = (-(-rows // tr), -(-hw // chunk))    # reduction (chunk) axis last

    sums = pl.pallas_call(
        functools.partial(_row_sum_kernel, hw=hw, chunk=chunk),
        out_shape=jax.ShapeDtypeStruct((rows, 1), jnp.float32),
        grid=grid,
        in_specs=[pl.BlockSpec((tr, chunk), lambda r, c: (r, c))],
        out_specs=pl.BlockSpec((tr, 1), lambda r, c: (r, 0)),
        compiler_params=pltpu.CompilerParams(
            dimension_semantics=("parallel", "arbitrary"),
            vmem_limit_bytes=vmem_limit,
        ),
        cost_estimate=pl.CostEstimate(
            flops=2 * rows * hw,                # streaming row sums
            transcendentals=0,                  # sqrt moved to the XLA epilogue
            bytes_accessed=rows * hw * itemsize + rows * 4,
        ),
    )(x2d)

    # Tiny (B,3) epilogue in XLA: means, Dr/Dg/Db, k, reg, combine.
    means = sums.reshape(B, 3) / jnp.float32(hw)            # [B,3] channel means
    d = (means - 0.5) ** 2                                   # Dr, Dg, Db
    k = jnp.sqrt(jnp.sum(d * d, axis=1, keepdims=True))      # [B,1]
    reg = jnp.mean(d[:, 0])                                  # mean_b |mr-0.5|^2
    loss = k + jnp.float32(regularization_weight) * reg      # [B,1]
    return loss.reshape(B, 1, 1, 1).astype(x.dtype)


def _reference(x, regularization_weight):
    mean_rgb = jnp.mean(x.astype(jnp.float32), axis=(2, 3), keepdims=True)  # [B,3,1,1]
    mr, mg, mb = jnp.split(mean_rgb, 3, axis=1)
    dr = (mr - 0.5) ** 2
    dg = (mg - 0.5) ** 2
    db = (mb - 0.5) ** 2
    k = jnp.sqrt(dr ** 2 + dg ** 2 + db ** 2)
    reg = jnp.mean(jnp.abs(mr - 0.5) ** 2)
    return k + regularization_weight * reg


if __name__ == "__main__":
    # Deterministic "parameter" of the module (constructor arg, no weights).
    regularization_weight = 0.1

    key = jax.random.PRNGKey(0)
    B, C, H, W = 2, 3, 16, 16
    x = jax.random.uniform(key, (B, C, H, W), dtype=jnp.float32)

    out = color_loss_with_regularization(x, regularization_weight)
    out = jax.block_until_ready(out)

    ref = _reference(x, regularization_weight)
    assert out.shape == (B, 1, 1, 1)
    assert jnp.allclose(out, ref, atol=1e-6, rtol=1e-6), (out, ref)

    print("KERNEL_OK")
</pallas_src>

<mosaic_0001>
module attributes {stable_mosaic.version = 11 : i64} {
  func.func @_row_sum_kernel(%arg0: i32, %arg1: i32, %arg2: memref<6x256xf32, #tpu.memory_space<vmem>>, %arg3: memref<6x1xf32, #tpu.memory_space<vmem>>) attributes {dimension_semantics = [#tpu.dimension_semantics<parallel>, #tpu.dimension_semantics<arbitrary>], iteration_bounds = array<i64: 1, 1>, scalar_prefetch = 0 : i64, scratch_operands = 0 : i64, tpu.core_type = #tpu.core_type<tc>, window_params = [{transform_indices = @transform_0, window_bounds = array<i64: 6, 256>}, {transform_indices = @transform_1, window_bounds = array<i64: 6, 1>}]} {
    %c0_i32 = arith.constant 0 : i32
    %0 = arith.cmpi eq, %arg1, %c0_i32 : i32
    %1 = arith.extui %0 : i1 to i32
    %c0_i32_0 = arith.constant 0 : i32
    %2 = arith.cmpi ne, %1, %c0_i32_0 : i32
    scf.if %2 {
      %cst_6 = arith.constant 0.000000e+00 : f32
      %9 = vector.broadcast %cst_6 : f32 to vector<6x1xf32>
      %c0_7 = arith.constant 0 : index
      %c0_8 = arith.constant 0 : index
      %10 = vector.load %arg3[%c0_7, %c0_8] : memref<6x1xf32, #tpu.memory_space<vmem>>, vector<6x1xf32>
      tpu.vector_store %arg3[%c0_7, %c0_8], %9 {strides = array<i32>} : memref<6x1xf32, #tpu.memory_space<vmem>>, vector<6x1xf32>,
    } else {
    }
    %c0 = arith.constant 0 : index
    %c0_1 = arith.constant 0 : index
    %3 = vector.load %arg2[%c0, %c0_1] : memref<6x256xf32, #tpu.memory_space<vmem>>, vector<6x256xf32>
    %c0_2 = arith.constant 0 : index
    %c0_3 = arith.constant 0 : index
    %4 = vector.load %arg3[%c0_2, %c0_3] : memref<6x1xf32, #tpu.memory_space<vmem>>, vector<6x1xf32>
    %cst = arith.constant dense<0.000000e+00> : vector<6xf32>
    %5 = vector.multi_reduction <add>, %3, %cst [1] : vector<6x256xf32> to vector<6xf32>
    %6 = vector.shape_cast %5 : vector<6xf32> to vector<6x1xf32>
    %7 = arith.addf %4, %6 : vector<6x1xf32>
    %c0_4 = arith.constant 0 : index
    %c0_5 = arith.constant 0 : index
    %8 = vector.load %arg3[%c0_4, %c0_5] : memref<6x1xf32, #tpu.memory_space<vmem>>, vector<6x1xf32>
    tpu.vector_store %arg3[%c0_4, %c0_5], %7 {strides = array<i32>} : memref<6x1xf32, #tpu.memory_space<vmem>>, vector<6x1xf32>,
    return
  }
  func.func @transform_0(%arg0: i32, %arg1: i32) -> (i32, i32) {
    %c0_i32 = arith.constant 0 : i32
    return %arg0, %arg1 : i32, i32
  }
  func.func @transform_1(%arg0: i32, %arg1: i32) -> (i32, i32) {
    %c0_i32 = arith.constant 0 : i32
    %c0_i32_0 = arith.constant 0 : i32
    return %arg0, %c0_i32 : i32, i32
  }
}

</mosaic_0001>

<llo_original>
// kernel: tpu_custom_call.1
$region0: #{tpu_custom_call.1}
  #allocation0 [shape = 'u32[]', space=smem, size = 0x4, offset = 0x4, fixed_abs, tag = 'smem constant byte address 0x4 - core index']
  #allocation1 [shape = 'u32[144,128]{1,0:T(1,128)}', space=vmem, size = 0x12000, scoped, tag = 'internal scratch']
  %s0 = inlined_call_operand.hbm [shape: f32[6,256], index: 0, kind: input, shape index: {}]
  %s1 = inlined_call_operand.vmem [shape: f32[6,1], index: 1, kind: output, shape index: {}]
  %s2 = sld [smem:[#allocation0]]
  $region22: #{tpu_custom_call.1} parent=0
    _
  %s4 = ssub.s32 1, %s2
  %s5 = scalar_select 0, %s4, %s2
  $region1: #{tpu_custom_call.1} parent=0
    #allocation2 [shape = 'u8[8192]{0}', space=vmem, size = 0x2000, scoped, tag = 'input window, operand 0, single buffered']
    #allocation3 [shape = 's32[1]{0}', space=sflag, size = 0x4, scoped, tag = 'scoped memory for tpu_custom_call.1']
    %6 = vsyncpa [#allocation3], 0
    // Predicated region
    $region2: #{tpu_custom_call.1} parent=1 // pred_check
      _
    $region3: #{tpu_custom_call.1} parent=1 // pred_check_branch
      %8 = sbr.rel (0) target = $region5
    $region4: #{tpu_custom_call.1} parent=1 // pred_region
      %s10 = ssub.s32 256, 256
      %11 = vsyncadd [#allocation3], %s10
      %s13 = sshll.u32 [#allocation2], 4
      %s14 = int_to_ptr.vmem [resolvable:$true] %s13
      %16 = dma.hbm_to_vmem [thread:$0]  %s0, 256, %s14, [#allocation3]
    $region5: #{tpu_custom_call.1} parent=1 // pred_fallthru
      _
    // Predicated region
    $region6: #{tpu_custom_call.1} parent=1 // pred_check
      _
    $region7: #{tpu_custom_call.1} parent=1 // pred_check_branch
      %18 = sbr.rel (0) target = $region9
    $region8: #{tpu_custom_call.1} parent=1 // pred_region
      %19 = dma.done [#allocation3], 256
    $region9: #{tpu_custom_call.1} parent=1 // pred_fallthru
      _
    %p20 = scmp.eq.s32.totalorder 0, 0
    // Predicated region
    $region10: #{tpu_custom_call.1} parent=1 // pred_check
      %p21 = pneg %p20
    $region11: #{tpu_custom_call.1} parent=1 // pred_check_branch
      %23 = sbr.rel (%p21) target = $region13
    $region12: #{tpu_custom_call.1} parent=1 // pred_region
      %vm24 = vcmask 5120
      %25 = vst.msk [vmem:[%s1] sm:$0x3f] %vm24, 0.0
    $region13: #{tpu_custom_call.1} parent=1 // pred_fallthru
      _
    %v26 = vld [vmem:[#allocation2] sm:$0x3f]
    %v27 = vld [vmem:[#allocation2 + $0x8] sm:$0x3f]
    %v28 = vld [vmem:[%s1] sm:$0x3f]
    %vm29 = vcmask 1045504
    %v30 = vsel %vm29, %v26, 0.0
    %v31 = vsel %vm29, %v27, 0.0
    %v32 = vadd.f32 %v30, %v31
    %33 = vadd.xlane.f32.xlu0 %v32
    %v34 = vpop.xlane.xlu0 %33
    %v35 = vadd.f32 %v28, %v34
    %vm36 = vcmask 5120
    %37 = vst.msk [vmem:[%s1] sm:$0x3f] %vm36, %v35
    // Predicated region
    $region14: #{tpu_custom_call.1} parent=1 // pred_check
      _
    $region15: #{tpu_custom_call.1} parent=1 // pred_check_branch
      %39 = sbr.rel (0) target = $region17
    $region16: #{tpu_custom_call.1} parent=1 // pred_region
      _
    $region17: #{tpu_custom_call.1} parent=1 // pred_fallthru
      _
    // Predicated region
    $region18: #{tpu_custom_call.1} parent=1 // pred_check
      _
    $region19: #{tpu_custom_call.1} parent=1 // pred_check_branch
      %41 = sbr.rel (0) target = $region21
    $region20: #{tpu_custom_call.1} parent=1 // pred_region
      _
    $region21: #{tpu_custom_call.1} parent=1 // pred_fallthru
      _
    %42 = vsyncpa [#allocation3], 1

</llo_original>
